<compile_context>
chip_gen: v7x
topology: tpu7x:2x2x1
jax: 0.10.0
libtpu: 0.0.40
codegen_flags: <defaults>
</compile_context>

<pallas_src>
import math

import jax
import jax.numpy as jnp
from jax.experimental import pallas as pl
from jax.experimental.pallas import tpu as pltpu

IMAGENET_MEAN = jnp.array([0.485, 0.456, 0.406], dtype=jnp.float32)
IMAGENET_STD = jnp.array([0.229, 0.224, 0.225], dtype=jnp.float32)

_LANES = 128


def _normalize_kernel(x_ref, mean_ref, inv_std_ref, o_ref):
    # x_ref: (TR, W) block; mean_ref/inv_std_ref: (1, W) resident rows.
    x = x_ref[...].astype(jnp.float32)
    o_ref[...] = ((x - mean_ref[...]) * inv_std_ref[...]).astype(o_ref.dtype)


def _round_up(x, m):
    return (x + m - 1) // m * m


def normalize(x, mean=None, std=None, *, tile_rows=1024):
    """(x - mean) / std with channel-last broadcast, as a Pallas TPU kernel.

    x: (..., C) array (e.g. NHWC images). mean/std: shape (C,).
    """
    mean = IMAGENET_MEAN if mean is None else jnp.asarray(mean)
    std = IMAGENET_STD if std is None else jnp.asarray(std)

    orig_shape = x.shape
    orig_dtype = x.dtype
    C = orig_shape[-1]
    assert mean.shape == (C,) and std.shape == (C,)

    # Lane-dense row width: smallest common multiple of C and 128 lanes.
    # (Channel phase stays aligned across rows because W % C == 0.)
    W = (C * _LANES) // math.gcd(C, _LANES)
    reps = W // C

    mean_row = jnp.tile(mean.astype(jnp.float32), reps).reshape(1, W)
    inv_std_row = jnp.tile(1.0 / std.astype(jnp.float32), reps).reshape(1, W)

    # Flatten, pad to a whole number of (tile_rows, W) tiles.
    E = x.size
    R = pl.cdiv(E, W)
    tr = min(int(tile_rows), _round_up(R, 16))
    tr = _round_up(tr, 16)          # sublane-safe for f32 (8) and bf16 (16)
    R_pad = _round_up(R, tr)
    pad = R_pad * W - E

    x_flat = x.reshape(-1)
    if pad:
        x_flat = jnp.pad(x_flat, (0, pad))
    x2d = x_flat.reshape(R_pad, W)

    grid = (R_pad // tr,)

    out2d = pl.pallas_call(
        _normalize_kernel,
        out_shape=jax.ShapeDtypeStruct((R_pad, W), orig_dtype),
        grid_spec=pltpu.PrefetchScalarGridSpec(
            num_scalar_prefetch=0,
            grid=grid,
            in_specs=[
                pl.BlockSpec((tr, W), lambda i: (i, 0)),
                pl.BlockSpec((1, W), lambda i: (0, 0)),   # mean (resident)
                pl.BlockSpec((1, W), lambda i: (0, 0)),   # 1/std (resident)
            ],
            out_specs=pl.BlockSpec((tr, W), lambda i: (i, 0)),
        ),
        compiler_params=pltpu.CompilerParams(
            dimension_semantics=("parallel",),
        ),
    )(x2d, mean_row, inv_std_row)

    out_flat = out2d.reshape(-1)
    if pad:
        out_flat = out_flat[:E]
    return out_flat.reshape(orig_shape)


if __name__ == "__main__":
    key = jax.random.PRNGKey(0)
    # Small image-like input: batch=2, H=16, W=16, C=3 (channels last).
    x = jax.random.uniform(key, (2, 16, 16, 3), dtype=jnp.float32)

    out = normalize(x)
    out = jax.block_until_ready(out)

    # Reference check (plain JAX, same broadcast semantics as the PyTorch module).
    ref = (x - IMAGENET_MEAN) / IMAGENET_STD
    assert out.shape == x.shape
    assert out.dtype == x.dtype
    assert jnp.allclose(out, ref, atol=1e-5, rtol=1e-5), "mismatch vs reference"

    print("KERNEL_OK")
</pallas_src>

<mosaic_0001>
module attributes {stable_mosaic.version = 11 : i64} {
  func.func @_normalize_kernel(%arg0: i32, %arg1: memref<16x384xf32, #tpu.memory_space<vmem>>, %arg2: memref<1x384xf32, #tpu.memory_space<vmem>>, %arg3: memref<1x384xf32, #tpu.memory_space<vmem>>, %arg4: memref<16x384xf32, #tpu.memory_space<vmem>>) attributes {dimension_semantics = [#tpu.dimension_semantics<parallel>], iteration_bounds = array<i64: 1>, scalar_prefetch = 0 : i64, scratch_operands = 0 : i64, tpu.core_type = #tpu.core_type<tc>, window_params = [{transform_indices = @transform_0, window_bounds = array<i64: 16, 384>}, {pipeline_mode = #tpu.pipeline_mode<synchronous>, transform_indices = @transform_1, window_bounds = array<i64: 1, 384>}, {pipeline_mode = #tpu.pipeline_mode<synchronous>, transform_indices = @transform_2, window_bounds = array<i64: 1, 384>}, {transform_indices = @transform_3, window_bounds = array<i64: 16, 384>}]} {
    %c0 = arith.constant 0 : index
    %c0_0 = arith.constant 0 : index
    %0 = vector.load %arg1[%c0, %c0_0] : memref<16x384xf32, #tpu.memory_space<vmem>>, vector<16x384xf32>
    %c0_1 = arith.constant 0 : index
    %c0_2 = arith.constant 0 : index
    %1 = vector.load %arg2[%c0_1, %c0_2] : memref<1x384xf32, #tpu.memory_space<vmem>>, vector<1x384xf32>
    %2 = vector.broadcast %1 : vector<1x384xf32> to vector<16x384xf32>
    %3 = arith.subf %0, %2 : vector<16x384xf32>
    %c0_3 = arith.constant 0 : index
    %c0_4 = arith.constant 0 : index
    %4 = vector.load %arg3[%c0_3, %c0_4] : memref<1x384xf32, #tpu.memory_space<vmem>>, vector<1x384xf32>
    %5 = vector.broadcast %4 : vector<1x384xf32> to vector<16x384xf32>
    %6 = arith.mulf %3, %5 : vector<16x384xf32>
    %c0_5 = arith.constant 0 : index
    %c0_6 = arith.constant 0 : index
    %7 = vector.load %arg4[%c0_5, %c0_6] : memref<16x384xf32, #tpu.memory_space<vmem>>, vector<16x384xf32>
    tpu.vector_store %arg4[%c0_5, %c0_6], %6 {strides = array<i32>} : memref<16x384xf32, #tpu.memory_space<vmem>>, vector<16x384xf32>,
    return
  }
  func.func @transform_0(%arg0: i32) -> (i32, i32) {
    %c0_i32 = arith.constant 0 : i32
    %c0_i32_0 = arith.constant 0 : i32
    return %arg0, %c0_i32 : i32, i32
  }
  func.func @transform_1(%arg0: i32) -> (i32, i32) {
    %c0_i32 = arith.constant 0 : i32
    %c0_i32_0 = arith.constant 0 : i32
    %c0_i32_1 = arith.constant 0 : i32
    return %c0_i32, %c0_i32_0 : i32, i32
  }
  func.func @transform_2(%arg0: i32) -> (i32, i32) {
    %c0_i32 = arith.constant 0 : i32
    %c0_i32_0 = arith.constant 0 : i32
    %c0_i32_1 = arith.constant 0 : i32
    return %c0_i32, %c0_i32_0 : i32, i32
  }
  func.func @transform_3(%arg0: i32) -> (i32, i32) {
    %c0_i32 = arith.constant 0 : i32
    %c0_i32_0 = arith.constant 0 : i32
    return %arg0, %c0_i32 : i32, i32
  }
}

</mosaic_0001>

<llo_original>
// kernel: tpu_custom_call.1
$region0: #{tpu_custom_call.1}
  #allocation0 [shape = 'u32[]', space=smem, size = 0x4, offset = 0x4, fixed_abs, tag = 'smem constant byte address 0x4 - core index']
  #allocation1 [shape = 'u32[144,128]{1,0:T(1,128)}', space=vmem, size = 0x12000, scoped, tag = 'internal scratch']
  %s0 = inlined_call_operand.hbm [shape: f32[16,384], index: 0, kind: input, shape index: {}]
  %s1 = inlined_call_operand.vmem [shape: f32[1,384], index: 1, kind: input, shape index: {}]
  %s2 = inlined_call_operand.vmem [shape: f32[1,384], index: 2, kind: input, shape index: {}]
  %s3 = inlined_call_operand.hbm [shape: f32[16,384], index: 3, kind: output, shape index: {}]
  %s4 = sld [smem:[#allocation0]]
  $region26: #{tpu_custom_call.1} parent=0
    _
  %s6 = ssub.s32 1, %s4
  %s7 = scalar_select 0, %s6, %s4
  $region1: #{tpu_custom_call.1} parent=0
    #allocation2 [shape = 'u8[24576]{0}', space=vmem, size = 0x6000, scoped, tag = 'input window, operand 0, single buffered']
    #allocation3 [shape = 's32[1]{0}', space=sflag, size = 0x4, scoped, tag = 'scoped memory for tpu_custom_call.1']
    #allocation4 [shape = 's32[1]{0}', space=sflag, size = 0x4, scoped, tag = 'scoped memory for tpu_custom_call.1']
    #allocation5 [shape = 'u8[24576]{0}', space=vmem, size = 0x6000, scoped, tag = 'output window, operand 0, single buffered']
    %8 = vsyncpa [#allocation3], 0
    %9 = vsyncpa [#allocation4], 0
    // Predicated region
    $region2: #{tpu_custom_call.1} parent=1 // pred_check
      _
    $region3: #{tpu_custom_call.1} parent=1 // pred_check_branch
      %11 = sbr.rel (0) target = $region5
    $region4: #{tpu_custom_call.1} parent=1 // pred_region
      %s13 = ssub.s32 768, 768
      %14 = vsyncadd [#allocation3], %s13
      %s15 = sshll.u32 [#allocation2], 4
      %s16 = int_to_ptr.vmem [resolvable:$true] %s15
      %21 = dma.hbm_to_vmem [thread:$0]  %s0, 768, %s16, [#allocation3], 384, 384, 24
    $region5: #{tpu_custom_call.1} parent=1 // pred_fallthru
      _
    // Predicated region
    $region6: #{tpu_custom_call.1} parent=1 // pred_check
      _
    $region7: #{tpu_custom_call.1} parent=1 // pred_check_branch
      %23 = sbr.rel (0) target = $region9
    $region8: #{tpu_custom_call.1} parent=1 // pred_region
      _
    $region9: #{tpu_custom_call.1} parent=1 // pred_fallthru
      _
    // Predicated region
    $region10: #{tpu_custom_call.1} parent=1 // pred_check
      _
    $region11: #{tpu_custom_call.1} parent=1 // pred_check_branch
      %25 = sbr.rel (0) target = $region13
    $region12: #{tpu_custom_call.1} parent=1 // pred_region
      _
    $region13: #{tpu_custom_call.1} parent=1 // pred_fallthru
      _
    // Predicated region
    $region14: #{tpu_custom_call.1} parent=1 // pred_check
      _
    $region15: #{tpu_custom_call.1} parent=1 // pred_check_branch
      %27 = sbr.rel (0) target = $region17
    $region16: #{tpu_custom_call.1} parent=1 // pred_region
      %28 = dma.done [#allocation3], 768
    $region17: #{tpu_custom_call.1} parent=1 // pred_fallthru
      _
    %v29 = vld [vmem:[#allocation2] sm:$0xff]
    %v30 = vld [vmem:[#allocation2 + $0x8] sm:$0xff]
    %v31 = vld [vmem:[#allocation2 + $0x10] sm:$0xff]
    %v32 = vld [vmem:[#allocation2 + $0x18] sm:$0xff]
    %v33 = vld [vmem:[#allocation2 + $0x20] sm:$0xff]
    %v34 = vld [vmem:[#allocation2 + $0x28] sm:$0xff]
    %v35 = vld [vmem:[%s1] sm:$0x7]
    %v37 = vlaneseq
    %v38 = vshrl.u32 %v37, 7
    %v39 = vsub.s32 0, %v38
    %v40 = vrot.slane %v35, %v39
    %v41 = vlaneseq
    %v42 = vshrl.u32 %v41, 7
    %v43 = vsub.s32 1, %v42
    %v44 = vrot.slane %v35, %v43
    %v45 = vlaneseq
    %v46 = vshrl.u32 %v45, 7
    %v47 = vsub.s32 2, %v46
    %v48 = vrot.slane %v35, %v47
    %v52 = vsub.f32 %v29, %v40
    %v53 = vsub.f32 %v30, %v44
    %v54 = vsub.f32 %v31, %v48
    %v55 = vsub.f32 %v32, %v40
    %v56 = vsub.f32 %v33, %v44
    %v57 = vsub.f32 %v34, %v48
    %v58 = vld [vmem:[%s2] sm:$0x7]
    %v60 = vlaneseq
    %v61 = vshrl.u32 %v60, 7
    %v62 = vsub.s32 0, %v61
    %v63 = vrot.slane %v58, %v62
    %v64 = vlaneseq
    %v65 = vshrl.u32 %v64, 7
    %v66 = vsub.s32 1, %v65
    %v67 = vrot.slane %v58, %v66
    %v68 = vlaneseq
    %v69 = vshrl.u32 %v68, 7
    %v70 = vsub.s32 2, %v69
    %v71 = vrot.slane %v58, %v70
    %v75 = vmul.f32 %v52, %v63
    %v76 = vmul.f32 %v53, %v67
    %v77 = vmul.f32 %v54, %v71
    %v78 = vmul.f32 %v55, %v63
    %v79 = vmul.f32 %v56, %v67
    %v80 = vmul.f32 %v57, %v71
    %81 = vst [vmem:[#allocation5] sm:$0xff] %v75
    %82 = vst [vmem:[#allocation5 + $0x8] sm:$0xff] %v76
    %83 = vst [vmem:[#allocation5 + $0x10] sm:$0xff] %v77
    %84 = vst [vmem:[#allocation5 + $0x18] sm:$0xff] %v78
    %85 = vst [vmem:[#allocation5 + $0x20] sm:$0xff] %v79
    %86 = vst [vmem:[#allocation5 + $0x28] sm:$0xff] %v80
    // Predicated region
    $region18: #{tpu_custom_call.1} parent=1 // pred_check
      _
    $region19: #{tpu_custom_call.1} parent=1 // pred_check_branch
      %88 = sbr.rel (0) target = $region21
    $region20: #{tpu_custom_call.1} parent=1 // pred_region
      %s90 = ssub.s32 768, 768
      %91 = vsyncadd [#allocation4], %s90
      %s92 = sshll.u32 [#allocation5], 4
      %s93 = int_to_ptr.vmem [resolvable:$true] %s92
      %98 = dma.vmem_to_hbm [thread:$0]  %s93, 768, %s3, [#allocation4], 384, 384, 24
    $region21: #{tpu_custom_call.1} parent=1 // pred_fallthru
      _
    // Predicated region
    $region22: #{tpu_custom_call.1} parent=1 // pred_check
      _
    $region23: #{tpu_custom_call.1} parent=1 // pred_check_branch
      %100 = sbr.rel (0) target = $region25
    $region24: #{tpu_custom_call.1} parent=1 // pred_region
      %101 = dma.done [#allocation4], 768
    $region25: #{tpu_custom_call.1} parent=1 // pred_fallthru
      _
    %102 = vsyncpa [#allocation3], 1
    %103 = vsyncpa [#allocation4], 1

</llo_original>
